<compile_context>
chip_gen: v6e
topology: v6e:2x2x1
jax: 0.10.0
libtpu: 0.0.40
codegen_flags: <defaults>
</compile_context>

<pallas_src>
import functools

import jax
import jax.numpy as jnp
import numpy as np
from jax.experimental import pallas as pl
from jax.experimental.pallas import tpu as pltpu

EPS = 1e-5  # nn.InstanceNorm2d default (affine=False, biased variance)

# parity (di or dj) -> {3x3-window offset -> ConvTranspose kernel tap}
# for the sub-pixel decomposition of ConvTranspose2d(k=4, s=2, p=1):
#   out[2i]   = x[i-1]*W[3] + x[i]*W[1]
#   out[2i+1] = x[i]  *W[2] + x[i+1]*W[0]
_TAP = ({0: 3, 1: 1}, {1: 2, 2: 0})


def _build_wmat(w_iohw, dtype):
    """Pack the (Cin, Cout, 4, 4) ConvTranspose2d weight into (9*Cin, 4*Cout).

    Row index = (dh*3 + dw)*Cin + ci   (3x3 input-window offset, in channel)
    Col index = (2*di + dj)*Cout + co  (output parity group, out channel)
    """
    cin, cout = w_iohw.shape[0], w_iohw.shape[1]
    wm = jnp.zeros((3, 3, cin, 4, cout), jnp.float32)
    for di in (0, 1):
        for dj in (0, 1):
            g = 2 * di + dj
            for dh, kh in _TAP[di].items():
                for dw, kw in _TAP[dj].items():
                    wm = wm.at[dh, dw, :, g, :].set(w_iohw[:, :, kh, kw])
    return wm.reshape(9 * cin, 4 * cout).astype(dtype)


def _convt_tile_kernel(x_ref, w_ref, y_ref, stats_ref, *, mxu_dtype):
    """One (batch, row-tile) grid step.

    x_ref     : (1, 1, th+2, W+2, Cin)  raw input row tile + 1-pixel halo
    w_ref     : (9*Cin, 4*Cout)         packed sub-pixel weights
    y_ref     : (1, th, W, 4*Cout)      raw (un-normalised) conv output tile
    stats_ref : (1, 2, Cout)            running [sum, sum_sq] per channel
    """
    t = pl.program_id(1)
    cin = x_ref.shape[-1]
    _, th, w, c4 = y_ref.shape
    cout = c4 // 4

    # --- im2col of the 3x3 neighbourhood -> one big-K MXU matmul ------------
    cols = []
    for dh in range(3):
        for dw in range(3):
            win = x_ref[0, 0, dh:dh + th, dw:dw + w, :]       # (th, W, Cin)
            cols.append(win.reshape(th * w, cin))
    patch = jnp.concatenate(cols, axis=-1)                     # (th*W, 9*Cin)
    if mxu_dtype is not None:
        patch = patch.astype(mxu_dtype)
    acc = jnp.dot(patch, w_ref[...],
                  preferred_element_type=jnp.float32)          # (th*W, 4*Cout)

    # --- one-pass instance-norm statistics (fold 4 parity groups -> Cout) ---
    s1 = jnp.sum(acc, axis=0, keepdims=True)                   # (1, 4*Cout)
    s2 = jnp.sum(acc * acc, axis=0, keepdims=True)             # (1, 4*Cout)
    s1 = (s1[:, 0 * cout:1 * cout] + s1[:, 1 * cout:2 * cout]
          + s1[:, 2 * cout:3 * cout] + s1[:, 3 * cout:4 * cout])
    s2 = (s2[:, 0 * cout:1 * cout] + s2[:, 1 * cout:2 * cout]
          + s2[:, 2 * cout:3 * cout] + s2[:, 3 * cout:4 * cout])

    @pl.when(t == 0)
    def _():
        stats_ref[...] = jnp.zeros_like(stats_ref)

    stats_ref[...] = stats_ref[...] + jnp.concatenate([s1, s2], axis=0)[None]

    y_ref[0] = acc.reshape(th, w, c4).astype(y_ref.dtype)


def _pick_tile_h(h, w, cin, cout, itemsize=4, budget_bytes=8 * 2**20):
    """Largest row tile (divisor of h) whose pipelined footprint fits VMEM."""
    best = 1
    for th in range(1, h + 1):
        if h % th:
            continue
        need = itemsize * (
            2 * (th + 2) * (w + 2) * cin      # double-buffered input tile
            + 2 * th * w * 4 * cout           # double-buffered output tile
            + th * w * (9 * cin + 4 * cout)   # im2col patch + f32 accumulator
            + 9 * cin * 4 * cout              # packed weights
        )
        if need <= budget_bytes:
            best = th
    return best


@functools.partial(jax.jit, static_argnames=("tile_h", "mxu_dtype"))
def unet_up(x_nchw, skip_nchw, weight_iohw, *, tile_h=None, mxu_dtype=None):
    """Forward pass of UNetUp (dropout=0.0).

    x_nchw      : (N, Cin, H, W)
    skip_nchw   : (N, Cskip, 2H, 2W)
    weight_iohw : (Cin, Cout, 4, 4)   nn.ConvTranspose2d weight layout
    returns     : (N, Cout + Cskip, 2H, 2W)   NCHW
    """
    # TODO(synk): dropout path not implemented (module default dropout=0.0).
    n, cin, h, w = x_nchw.shape
    cout = weight_iohw.shape[1]
    ho, wo = 2 * h, 2 * w

    if tile_h is None:
        tile_h = _pick_tile_h(h, w, cin, cout)
    tile_h = min(tile_h, h)
    if h % tile_h:
        raise ValueError(f"tile_h={tile_h} must divide H={h}")
    n_tiles = h // tile_h

    # ---- wrapper glue: NHWC + 1-pixel halo, sliced into overlapping row
    # tiles.  Only the small low-res input is touched; the 2x-upsampled /
    # zero-dilated image is never materialised in HBM.
    x = jnp.transpose(x_nchw, (0, 2, 3, 1))                    # (N, H, W, Cin)
    xp = jnp.pad(x, ((0, 0), (1, 1), (1, 1), (0, 0)))          # (N, H+2, W+2, Cin)
    xt = jnp.stack(
        [xp[:, t * tile_h: t * tile_h + tile_h + 2] for t in range(n_tiles)],
        axis=1)                                                # (N, T, th+2, W+2, Cin)

    wmat = _build_wmat(weight_iohw, mxu_dtype or x_nchw.dtype)  # (9*Cin, 4*Cout)

    kernel = functools.partial(_convt_tile_kernel, mxu_dtype=mxu_dtype)
    conv_raw, stats = pl.pallas_call(
        kernel,
        out_shape=(
            jax.ShapeDtypeStruct((n, h, w, 4 * cout), jnp.float32),
            jax.ShapeDtypeStruct((n, 2, cout), jnp.float32),
        ),
        grid_spec=pltpu.PrefetchScalarGridSpec(
            num_scalar_prefetch=0,
            grid=(n, n_tiles),
            in_specs=[
                pl.BlockSpec((1, 1, tile_h + 2, w + 2, cin),
                             lambda b, t: (b, t, 0, 0, 0)),
                pl.BlockSpec((9 * cin, 4 * cout), lambda b, t: (0, 0)),
            ],
            out_specs=[
                pl.BlockSpec((1, tile_h, w, 4 * cout), lambda b, t: (b, t, 0, 0)),
                pl.BlockSpec((1, 2, cout), lambda b, t: (b, 0, 0)),
            ],
        ),
        compiler_params=pltpu.CompilerParams(
            dimension_semantics=("parallel", "arbitrary"),
            vmem_limit_bytes=48 * 1024 * 1024,
        ),
    )(xt, wmat)

    # ---- XLA epilogue: instance-norm (global spatial stats), ReLU,
    # depth-to-space to (2H, 2W, Cout), skip concat, back to NCHW.
    m = float(ho * wo)
    mean = stats[:, 0, :] / m                                   # (N, Cout)
    var = stats[:, 1, :] / m - mean * mean
    inv = jax.lax.rsqrt(var + EPS)
    mean4 = jnp.tile(mean, (1, 4))[:, None, None, :]            # (N,1,1,4*Cout)
    inv4 = jnp.tile(inv, (1, 4))[:, None, None, :]
    y = jnp.maximum((conv_raw - mean4) * inv4, 0.0)             # (N,H,W,4*Cout)
    y = y.reshape(n, h, w, 2, 2, cout).transpose(0, 1, 3, 2, 4, 5)
    y = y.reshape(n, ho, wo, cout).astype(x_nchw.dtype)

    skip = jnp.transpose(skip_nchw, (0, 2, 3, 1))               # (N, 2H, 2W, Cskip)
    out = jnp.concatenate([y, skip], axis=-1)
    return jnp.transpose(out, (0, 3, 1, 2))                     # NCHW


def unet_up_reference(x_nchw, skip_nchw, weight_iohw):
    """Pure-JAX reference matching the PyTorch module semantics."""
    # ConvTranspose2d(k=4, s=2, p=1) == dilated conv with flipped kernel.
    w_oihw = jnp.transpose(weight_iohw, (1, 0, 2, 3))[:, :, ::-1, ::-1]
    y = jax.lax.conv_general_dilated(
        x_nchw, w_oihw, window_strides=(1, 1), padding=((2, 2), (2, 2)),
        lhs_dilation=(2, 2), dimension_numbers=("NCHW", "OIHW", "NCHW"))
    mean = jnp.mean(y, axis=(2, 3), keepdims=True)
    var = jnp.mean(jnp.square(y - mean), axis=(2, 3), keepdims=True)
    y = jnp.maximum((y - mean) * jax.lax.rsqrt(var + EPS), 0.0)
    return jnp.concatenate([y, skip_nchw], axis=1)


if __name__ == "__main__":
    # Small deterministic config: in_size=4, out_size=8, H=W=16, batch=2.
    N, CIN, COUT, H, W = 2, 4, 8, 16, 16
    CSKIP = COUT

    key = jax.random.PRNGKey(0)
    kx, ks, kw = jax.random.split(key, 3)
    x = jax.random.normal(kx, (N, CIN, H, W), dtype=jnp.float32)
    skip = jax.random.normal(ks, (N, CSKIP, 2 * H, 2 * W), dtype=jnp.float32)
    bound = 1.0 / np.sqrt(COUT * 4 * 4)
    weight = jax.random.uniform(kw, (CIN, COUT, 4, 4), dtype=jnp.float32,
                                minval=-bound, maxval=bound)

    # tile_h=8 -> grid (batch=2, row_tiles=2): exercises the multi-tile
    # stats-accumulation path as well as the "parallel" batch axis.
    out = jax.block_until_ready(unet_up(x, skip, weight, tile_h=8))
    ref = jax.block_until_ready(unet_up_reference(x, skip, weight))

    assert out.shape == (N, COUT + CSKIP, 2 * H, 2 * W), out.shape
    max_err = float(np.max(np.abs(np.asarray(out) - np.asarray(ref))))
    assert np.allclose(np.asarray(out), np.asarray(ref), atol=1e-4, rtol=1e-4), max_err

    print("KERNEL_OK")
</pallas_src>

<mosaic_0001>
module attributes {stable_mosaic.version = 11 : i64} {
  func.func @_convt_tile_kernel(%arg0: i32, %arg1: i32, %arg2: memref<1x1x10x18x4xf32, #tpu.memory_space<vmem>>, %arg3: memref<36x32xf32, #tpu.memory_space<vmem>>, %arg4: memref<1x8x16x32xf32, #tpu.memory_space<vmem>>, %arg5: memref<1x2x8xf32, #tpu.memory_space<vmem>>) attributes {dimension_semantics = [#tpu.dimension_semantics<parallel>, #tpu.dimension_semantics<arbitrary>], iteration_bounds = array<i64: 2, 2>, scalar_prefetch = 0 : i64, scratch_operands = 0 : i64, tpu.core_type = #tpu.core_type<tc>, window_params = [{transform_indices = @transform_0, window_bounds = array<i64: 1, 1, 10, 18, 4>}, {pipeline_mode = #tpu.pipeline_mode<synchronous>, transform_indices = @transform_1, window_bounds = array<i64: 36, 32>}, {transform_indices = @transform_2, window_bounds = array<i64: 1, 8, 16, 32>}, {transform_indices = @transform_3, window_bounds = array<i64: 1, 2, 8>}]} {
    %c0 = arith.constant 0 : index
    %c0_0 = arith.constant 0 : index
    %c0_1 = arith.constant 0 : index
    %c0_2 = arith.constant 0 : index
    %c0_3 = arith.constant 0 : index
    %0 = vector.load %arg2[%c0, %c0_0, %c0_1, %c0_2, %c0_3] : memref<1x1x10x18x4xf32, #tpu.memory_space<vmem>>, vector<1x1x8x16x4xf32>
    %1 = vector.shape_cast %0 : vector<1x1x8x16x4xf32> to vector<8x16x4xf32>
    %2 = vector.shape_cast %1 : vector<8x16x4xf32> to vector<128x4xf32>
    %c0_4 = arith.constant 0 : index
    %c0_5 = arith.constant 0 : index
    %c0_6 = arith.constant 0 : index
    %c1 = arith.constant 1 : index
    %c0_7 = arith.constant 0 : index
    %3 = vector.load %arg2[%c0_4, %c0_5, %c0_6, %c1, %c0_7] : memref<1x1x10x18x4xf32, #tpu.memory_space<vmem>>, vector<1x1x8x16x4xf32>
    %4 = vector.shape_cast %3 : vector<1x1x8x16x4xf32> to vector<8x16x4xf32>
    %5 = vector.shape_cast %4 : vector<8x16x4xf32> to vector<128x4xf32>
    %c0_8 = arith.constant 0 : index
    %c0_9 = arith.constant 0 : index
    %c0_10 = arith.constant 0 : index
    %c2 = arith.constant 2 : index
    %c0_11 = arith.constant 0 : index
    %6 = vector.load %arg2[%c0_8, %c0_9, %c0_10, %c2, %c0_11] : memref<1x1x10x18x4xf32, #tpu.memory_space<vmem>>, vector<1x1x8x16x4xf32>
    %7 = vector.shape_cast %6 : vector<1x1x8x16x4xf32> to vector<8x16x4xf32>
    %8 = vector.shape_cast %7 : vector<8x16x4xf32> to vector<128x4xf32>
    %c0_12 = arith.constant 0 : index
    %c0_13 = arith.constant 0 : index
    %c1_14 = arith.constant 1 : index
    %c0_15 = arith.constant 0 : index
    %c0_16 = arith.constant 0 : index
    %9 = vector.load %arg2[%c0_12, %c0_13, %c1_14, %c0_15, %c0_16] : memref<1x1x10x18x4xf32, #tpu.memory_space<vmem>>, vector<1x1x8x16x4xf32>
    %10 = vector.shape_cast %9 : vector<1x1x8x16x4xf32> to vector<8x16x4xf32>
    %11 = vector.shape_cast %10 : vector<8x16x4xf32> to vector<128x4xf32>
    %c0_17 = arith.constant 0 : index
    %c0_18 = arith.constant 0 : index
    %c1_19 = arith.constant 1 : index
    %c1_20 = arith.constant 1 : index
    %c0_21 = arith.constant 0 : index
    %12 = vector.load %arg2[%c0_17, %c0_18, %c1_19, %c1_20, %c0_21] : memref<1x1x10x18x4xf32, #tpu.memory_space<vmem>>, vector<1x1x8x16x4xf32>
    %13 = vector.shape_cast %12 : vector<1x1x8x16x4xf32> to vector<8x16x4xf32>
    %14 = vector.shape_cast %13 : vector<8x16x4xf32> to vector<128x4xf32>
    %c0_22 = arith.constant 0 : index
    %c0_23 = arith.constant 0 : index
    %c1_24 = arith.constant 1 : index
    %c2_25 = arith.constant 2 : index
    %c0_26 = arith.constant 0 : index
    %15 = vector.load %arg2[%c0_22, %c0_23, %c1_24, %c2_25, %c0_26] : memref<1x1x10x18x4xf32, #tpu.memory_space<vmem>>, vector<1x1x8x16x4xf32>
    %16 = vector.shape_cast %15 : vector<1x1x8x16x4xf32> to vector<8x16x4xf32>
    %17 = vector.shape_cast %16 : vector<8x16x4xf32> to vector<128x4xf32>
    %c0_27 = arith.constant 0 : index
    %c0_28 = arith.constant 0 : index
    %c2_29 = arith.constant 2 : index
    %c0_30 = arith.constant 0 : index
    %c0_31 = arith.constant 0 : index
    %18 = vector.load %arg2[%c0_27, %c0_28, %c2_29, %c0_30, %c0_31] : memref<1x1x10x18x4xf32, #tpu.memory_space<vmem>>, vector<1x1x8x16x4xf32>
    %19 = vector.shape_cast %18 : vector<1x1x8x16x4xf32> to vector<8x16x4xf32>
    %20 = vector.shape_cast %19 : vector<8x16x4xf32> to vector<128x4xf32>
    %c0_32 = arith.constant 0 : index
    %c0_33 = arith.constant 0 : index
    %c2_34 = arith.constant 2 : index
    %c1_35 = arith.constant 1 : index
    %c0_36 = arith.constant 0 : index
    %21 = vector.load %arg2[%c0_32, %c0_33, %c2_34, %c1_35, %c0_36] : memref<1x1x10x18x4xf32, #tpu.memory_space<vmem>>, vector<1x1x8x16x4xf32>
    %22 = vector.shape_cast %21 : vector<1x1x8x16x4xf32> to vector<8x16x4xf32>
    %23 = vector.shape_cast %22 : vector<8x16x4xf32> to vector<128x4xf32>
    %c0_37 = arith.constant 0 : index
    %c0_38 = arith.constant 0 : index
    %c2_39 = arith.constant 2 : index
    %c2_40 = arith.constant 2 : index
    %c0_41 = arith.constant 0 : index
    %24 = vector.load %arg2[%c0_37, %c0_38, %c2_39, %c2_40, %c0_41] : memref<1x1x10x18x4xf32, #tpu.memory_space<vmem>>, vector<1x1x8x16x4xf32>
    %25 = vector.shape_cast %24 : vector<1x1x8x16x4xf32> to vector<8x16x4xf32>
    %26 = vector.shape_cast %25 : vector<8x16x4xf32> to vector<128x4xf32>
    %27 = tpu.concatenate %2, %5, %8, %11, %14, %17, %20, %23, %26 in 1 : vector<128x4xf32>, vector<128x4xf32>, vector<128x4xf32>, vector<128x4xf32>, vector<128x4xf32>, vector<128x4xf32>, vector<128x4xf32>, vector<128x4xf32>, vector<128x4xf32> -> vector<128x36xf32>
    %c0_42 = arith.constant 0 : index
    %c0_43 = arith.constant 0 : index
    %28 = vector.load %arg3[%c0_42, %c0_43] : memref<36x32xf32, #tpu.memory_space<vmem>>, vector<36x32xf32>
    %cst = arith.constant dense<0.000000e+00> : vector<128x32xf32>
    %29 = tpu.matmul %27, %28, %cst {dimension_numbers = #tpu.dot_dimension_numbers<[1], [0], [0], [1], [0, 0, 1, 1], [], []>} : vector<128x36xf32>, vector<36x32xf32>, vector<128x32xf32> -> vector<128x32xf32>
    %cst_44 = arith.constant dense<0.000000e+00> : vector<32xf32>
    %30 = vector.multi_reduction <add>, %29, %cst_44 [0] : vector<128x32xf32> to vector<32xf32>
    %31 = vector.shape_cast %30 : vector<32xf32> to vector<1x32xf32>
    %32 = arith.mulf %29, %29 : vector<128x32xf32>
    %cst_45 = arith.constant dense<0.000000e+00> : vector<32xf32>
    %33 = vector.multi_reduction <add>, %32, %cst_45 [0] : vector<128x32xf32> to vector<32xf32>
    %34 = vector.shape_cast %33 : vector<32xf32> to vector<1x32xf32>
    %35 = vector.extract_strided_slice %31 {offsets = [0, 0], sizes = [1, 8], strides = [1, 1]} : vector<1x32xf32> to vector<1x8xf32>
    %36 = vector.extract_strided_slice %31 {offsets = [0, 8], sizes = [1, 8], strides = [1, 1]} : vector<1x32xf32> to vector<1x8xf32>
    %37 = arith.addf %35, %36 : vector<1x8xf32>
    %38 = vector.extract_strided_slice %31 {offsets = [0, 16], sizes = [1, 8], strides = [1, 1]} : vector<1x32xf32> to vector<1x8xf32>
    %39 = arith.addf %37, %38 : vector<1x8xf32>
    %40 = vector.extract_strided_slice %31 {offsets = [0, 24], sizes = [1, 8], strides = [1, 1]} : vector<1x32xf32> to vector<1x8xf32>
    %41 = arith.addf %39, %40 : vector<1x8xf32>
    %42 = vector.extract_strided_slice %34 {offsets = [0, 0], sizes = [1, 8], strides = [1, 1]} : vector<1x32xf32> to vector<1x8xf32>
    %43 = vector.extract_strided_slice %34 {offsets = [0, 8], sizes = [1, 8], strides = [1, 1]} : vector<1x32xf32> to vector<1x8xf32>
    %44 = arith.addf %42, %43 : vector<1x8xf32>
    %45 = vector.extract_strided_slice %34 {offsets = [0, 16], sizes = [1, 8], strides = [1, 1]} : vector<1x32xf32> to vector<1x8xf32>
    %46 = arith.addf %44, %45 : vector<1x8xf32>
    %47 = vector.extract_strided_slice %34 {offsets = [0, 24], sizes = [1, 8], strides = [1, 1]} : vector<1x32xf32> to vector<1x8xf32>
    %48 = arith.addf %46, %47 : vector<1x8xf32>
    %c0_i32 = arith.constant 0 : i32
    %49 = arith.cmpi eq, %arg1, %c0_i32 : i32
    %50 = arith.extui %49 : i1 to i32
    %c0_i32_46 = arith.constant 0 : i32
    %51 = arith.cmpi ne, %50, %c0_i32_46 : i32
    scf.if %51 {
      %cst_57 = arith.constant 0.000000e+00 : f32
      %61 = vector.broadcast %cst_57 : f32 to vector<1x2x8xf32>
      %c0_58 = arith.constant 0 : index
      %c0_59 = arith.constant 0 : index
      %c0_60 = arith.constant 0 : index
      %62 = vector.load %arg5[%c0_58, %c0_59, %c0_60] : memref<1x2x8xf32, #tpu.memory_space<vmem>>, vector<1x2x8xf32>
      tpu.vector_store %arg5[%c0_58, %c0_59, %c0_60], %61 {strides = array<i32>} : memref<1x2x8xf32, #tpu.memory_space<vmem>>, vector<1x2x8xf32>,
    } else {
    }
    %c0_47 = arith.constant 0 : index
    %c0_48 = arith.constant 0 : index
    %c0_49 = arith.constant 0 : index
    %52 = vector.load %arg5[%c0_47, %c0_48, %c0_49] : memref<1x2x8xf32, #tpu.memory_space<vmem>>, vector<1x2x8xf32>
    %53 = tpu.concatenate %41, %48 in 0 : vector<1x8xf32>, vector<1x8xf32> -> vector<2x8xf32>
    %54 = vector.shape_cast %53 : vector<2x8xf32> to vector<1x2x8xf32>
    %55 = arith.addf %52, %54 : vector<1x2x8xf32>
    %c0_50 = arith.constant 0 : index
    %c0_51 = arith.constant 0 : index
    %c0_52 = arith.constant 0 : index
    %56 = vector.load %arg5[%c0_50, %c0_51, %c0_52] : memref<1x2x8xf32, #tpu.memory_space<vmem>>, vector<1x2x8xf32>
    tpu.vector_store %arg5[%c0_50, %c0_51, %c0_52], %55 {strides = array<i32>} : memref<1x2x8xf32, #tpu.memory_space<vmem>>, vector<1x2x8xf32>,
    %57 = vector.shape_cast %29 : vector<128x32xf32> to vector<8x16x32xf32>
    %c0_53 = arith.constant 0 : index
    %c0_54 = arith.constant 0 : index
    %c0_55 = arith.constant 0 : index
    %c0_56 = arith.constant 0 : index
    %58 = vector.load %arg4[%c0_53, %c0_54, %c0_55, %c0_56] : memref<1x8x16x32xf32, #tpu.memory_space<vmem>>, vector<1x8x16x32xf32>
    %59 = vector.shape_cast %58 : vector<1x8x16x32xf32> to vector<8x16x32xf32>
    %60 = vector.shape_cast %57 : vector<8x16x32xf32> to vector<1x8x16x32xf32>
    tpu.vector_store %arg4[%c0_53, %c0_54, %c0_55, %c0_56], %60 {strides = array<i32>} : memref<1x8x16x32xf32, #tpu.memory_space<vmem>>, vector<1x8x16x32xf32>,
    return
  }
  func.func @transform_0(%arg0: i32, %arg1: i32) -> (i32, i32, i32, i32, i32) {
    %c0_i32 = arith.constant 0 : i32
    %c0_i32_0 = arith.constant 0 : i32
    %c0_i32_1 = arith.constant 0 : i32
    %c0_i32_2 = arith.constant 0 : i32
    return %arg0, %arg1, %c0_i32, %c0_i32_0, %c0_i32_1 : i32, i32, i32, i32, i32
  }
  func.func @transform_1(%arg0: i32, %arg1: i32) -> (i32, i32) {
    %c0_i32 = arith.constant 0 : i32
    %c0_i32_0 = arith.constant 0 : i32
    %c0_i32_1 = arith.constant 0 : i32
    return %c0_i32, %c0_i32_0 : i32, i32
  }
  func.func @transform_2(%arg0: i32, %arg1: i32) -> (i32, i32, i32, i32) {
    %c0_i32 = arith.constant 0 : i32
    %c0_i32_0 = arith.constant 0 : i32
    %c0_i32_1 = arith.constant 0 : i32
    return %arg0, %arg1, %c0_i32, %c0_i32_0 : i32, i32, i32, i32
  }
  func.func @transform_3(%arg0: i32, %arg1: i32) -> (i32, i32, i32) {
    %c0_i32 = arith.constant 0 : i32
    %c0_i32_0 = arith.constant 0 : i32
    %c0_i32_1 = arith.constant 0 : i32
    return %arg0, %c0_i32, %c0_i32_0 : i32, i32, i32
  }
}

</mosaic_0001>

<llo_original>
// kernel: unet_up.1
$region0: #{unet_up.1}
  #allocation0 [shape = 'u32[]', space=smem, size = 0x4, offset = 0x4, fixed_abs, tag = 'smem constant byte address 0x4 - core index']
  #allocation1 [shape = 'u32[144,128]{1,0:T(1,128)}', space=vmem, size = 0x12000, scoped, tag = 'internal scratch']
  %s0 = inlined_call_operand.vmem [shape: f32[2,2,10,18,4], index: 0, kind: input, shape index: {}]
  %s1 = inlined_call_operand.vmem [shape: f32[36,32], index: 1, kind: input, shape index: {}]
  %s2 = inlined_call_operand.vmem [shape: f32[2,16,16,32], index: 2, kind: output, shape index: {0}]
  %s3 = inlined_call_operand.vmem [shape: f32[2,2,8], index: 3, kind: output, shape index: {1}]
  %4 = xla_tuple %s2, %s3
  %s5 = sld [smem:[#allocation0]]
  $region53: #{unet_up.1} parent=0
    _
  %s7 = ssub.s32 1, %s5
  %s8 = scalar_select 0, %s7, %s5
  loop: start=0, step=1, limit=6
  $region2: #{unet_up.1} parent=0 // loop_pre_header
    _
  $region3: #{unet_up.1} parent=0 // loop_header
    %s10 = sphi 0, %s14
    %p11 = scmp.ge.s32.totalorder %s10, 6
    %s17 = sphi 0, %s29
    %s18 = sphi 0, %s25
    %s19 = sphi 0, %s17
    %s20 = sphi 0, %s18
    %s21 = sphi 0, %s19
    %s22 = sphi 0, %s20
    %s34 = sphi 0, %s36
    %s37 = sphi 0, %s34
    %s38 = sphi 0, %s37
    %s54 = sphi 0, %s38
    %s58 = sphi 0, %s58
    %s60 = sphi 0, %s58
    %s61 = sphi 0, %s60
    %s75 = sphi 0, %s61
    %s83 = sphi 0, %s85
    %s86 = sphi 0, %s83
    %s87 = sphi 0, %s86
    %s103 = sphi 0, %s87
    %s109 = sphi 0, %s111
    %s112 = sphi 0, %s109
    %s113 = sphi 0, %s112
    %s129 = sphi 0, %s113
  $region4: #{unet_up.1} parent=0 // loop_header_branch
    %13 = sbr.rel (%p11) target = $region8
  $region5: #{unet_up.1} parent=0 // loop_body
    %s15 = ssub.s32 %s10, 1
    %s16 = ssub.s32 %s10, 2
    %s23 = sadd.s32 1, %s18
    %p24 = scmp.ge.s32.totalorder %s23, 2
    %s25 = scalar_select %p24, 0, %s23
    %s26 = sadd.s32 1, %s17
    %s27 = scalar_select %p24, %s26, %s17
    %p28 = scmp.ge.s32.totalorder %s27, 2
    %s29 = scalar_select %p28, 0, %s27
    %s30 = ssub.s32 %s17, %s29
    %s31 = ssub.s32 %s18, %s25
    %s32 = sor.u32 %s30, %s31
    %p33 = scmp.eq.s32.totalorder %s32, 0
    %s35 = sadd.s32 %s34, 1
    %s36 = scalar_select %p33, %s34, %s35
    %p39 = pneg %p33
    %p40 = scmp.eq.s32.totalorder %s10, 3
    %p41 = por %p39, %p40
    %p42 = scmp.ne.s32.totalorder %s34, %s37
    %p43 = scmp.eq.s32.totalorder %s10, 0
    %p44 = por %p42, %p43
    %p45 = scmp.ne.s32.totalorder %s34, %s37
    %p46 = scmp.eq.s32.totalorder %s15, 3
    %p47 = por %p45, %p46
    %p48 = scmp.ne.s32.totalorder %s37, %s38
    %p49 = scmp.eq.s32.totalorder %s15, 0
    %p50 = por %p48, %p49
    %p51 = scmp.ne.s32.totalorder %s37, %s38
    %p52 = scmp.eq.s32.totalorder %s16, 3
    %p53 = por %p51, %p52
    %p55 = scmp.ne.s32.totalorder %s38, %s54
    %p56 = scmp.eq.s32.totalorder %s16, 0
    %p57 = por %p55, %p56
    %s59 = sadd.s32 %s58, 1
    %p62 = scmp.eq.s32.totalorder %s10, 3
    %p63 = scmp.ne.s32.totalorder %s58, %s60
    %p64 = scmp.eq.s32.totalorder %s10, 0
    %p65 = por %p63, %p64
    %p66 = scmp.ne.s32.totalorder %s58, %s60
    %p67 = scmp.eq.s32.totalorder %s15, 3
    %p68 = por %p66, %p67
    %p69 = scmp.ne.s32.totalorder %s60, %s61
    %p70 = scmp.eq.s32.totalorder %s15, 0
    %p71 = por %p69, %p70
    %p72 = scmp.ne.s32.totalorder %s60, %s61
    %p73 = scmp.eq.s32.totalorder %s16, 3
    %p74 = por %p72, %p73
    %p76 = scmp.ne.s32.totalorder %s61, %s75
    %p77 = scmp.eq.s32.totalorder %s16, 0
    %p78 = por %p76, %p77
    %s79 = ssub.s32 %s17, %s29
    %s80 = ssub.s32 %s18, %s25
    %s81 = sor.u32 %s79, %s80
    %p82 = scmp.eq.s32.totalorder %s81, 0
    %s84 = sadd.s32 %s83, 1
    %s85 = scalar_select %p82, %s83, %s84
    %p88 = pneg %p82
    %p89 = scmp.eq.s32.totalorder %s10, 3
    %p90 = por %p88, %p89
    %p91 = scmp.ne.s32.totalorder %s83, %s86
    %p92 = scmp.eq.s32.totalorder %s10, 0
    %p93 = por %p91, %p92
    %p94 = scmp.ne.s32.totalorder %s83, %s86
    %p95 = scmp.eq.s32.totalorder %s15, 3
    %p96 = por %p94, %p95
    %p97 = scmp.ne.s32.totalorder %s86, %s87
    %p98 = scmp.eq.s32.totalorder %s15, 0
    %p99 = por %p97, %p98
    %p100 = scmp.ne.s32.totalorder %s86, %s87
    %p101 = scmp.eq.s32.totalorder %s16, 3
    %p102 = por %p100, %p101
    %p104 = scmp.ne.s32.totalorder %s87, %s103
    %p105 = scmp.eq.s32.totalorder %s16, 0
    %p106 = por %p104, %p105
    %s107 = ssub.s32 %s17, %s29
    %p108 = scmp.eq.s32.totalorder %s107, 0
    %s110 = sadd.s32 %s109, 1
    %s111 = scalar_select %p108, %s109, %s110
    %p114 = pneg %p108
    %p115 = scmp.eq.s32.totalorder %s10, 3
    %p116 = por %p114, %p115
    %p117 = scmp.ne.s32.totalorder %s109, %s112
    %p118 = scmp.eq.s32.totalorder %s10, 0
    %p119 = por %p117, %p118
    %p120 = scmp.ne.s32.totalorder %s109, %s112
    %p121 = scmp.eq.s32.totalorder %s15, 3
    %p122 = por %p120, %p121
    %p123 = scmp.ne.s32.totalorder %s112, %s113
    %p124 = scmp.eq.s32.totalorder %s15, 0
    %p125 = por %p123, %p124
    %p126 = scmp.ne.s32.totalorder %s112, %s113
    %p127 = scmp.eq.s32.totalorder %s16, 3
    %p128 = por %p126, %p127
    %p130 = scmp.ne.s32.totalorder %s113, %s129
    %p131 = scmp.eq.s32.totalorder %s16, 0
    %p132 = por %p130, %p131
    %p133 = scmp.le.s32.totalorder 1, %s10
    %p134 = scmp.lt.s32.totalorder %s10, 5
    %p135 = pnand %p133, %p134
    %p136 = pneg %p135
    // Predicated region
    $region9: #{unet_up.1} parent=5 // pred_check
      _
    $region10: #{unet_up.1} parent=5 // pred_check_branch
      %138 = sbr.rel (%p135) target = $region12
    $region11: #{unet_up.1} parent=5 // pred_region
      %s139 = ssub.s32 %s10, 1
      // Predicated region
      $region13: #{unet_up.1} parent=11 // pred_check
        %p140 = pneg %p71
      $region14: #{unet_up.1} parent=11 // pred_check_branch
        %142 = sbr.rel (%p140) target = $region16
      $region15: #{unet_up.1} parent=11 // pred_region
        _
      $region16: #{unet_up.1} parent=11 // pred_fallthru
        _
    $region12: #{unet_up.1} parent=5 // pred_fallthru
      _
    %p143 = scmp.lt.s32.totalorder %s10, 4
    // Predicated region
    $region17: #{unet_up.1} parent=5 // pred_check
      %p144 = pneg %p143
    $region18: #{unet_up.1} parent=5 // pred_check_branch
      %146 = sbr.rel (%p144) target = $region20
    $region19: #{unet_up.1} parent=5 // pred_region
      // Predicated region
      $region21: #{unet_up.1} parent=19 // pred_check
        %p147 = pneg %p44
      $region22: #{unet_up.1} parent=19 // pred_check_branch
        %149 = sbr.rel (%p147) target = $region24
      $region23: #{unet_up.1} parent=19 // pred_region
        %p150 = scmp.lt.s32.totalorder %s17, 1
        %s151 = scalar_select %p150, %s17, 1
        %p152 = scmp.lt.s32.totalorder %s18, 1
        %s153 = scalar_select %p152, %s18, 1
        %s154 = smul.addr %s153, 30
        %s155 = smul.addr %s151, 60
        %s156 = sadd.s32 %s154, %s155
        %s157 = smul.addr %s156, 8
        %s158 = scalar_lea.vmem %s0, %s157
      $region24: #{unet_up.1} parent=19 // pred_fallthru
        _
    $region20: #{unet_up.1} parent=5 // pred_fallthru
      _
    %p159 = scmp.le.s32.totalorder 1, %s10
    %p160 = scmp.lt.s32.totalorder %s10, 5
    %p161 = pnand %p159, %p160
    %p162 = pneg %p161
    // Predicated region
    $region25: #{unet_up.1} parent=5 // pred_check
      _
    $region26: #{unet_up.1} parent=5 // pred_check_branch
      %164 = sbr.rel (%p161) target = $region28
    $region27: #{unet_up.1} parent=5 // pred_region
      %s165 = ssub.s32 %s10, 1
      %p166 = scmp.lt.s32.totalorder %s19, 1
      %s167 = scalar_select %p166, %s19, 1
      %p168 = scmp.lt.s32.totalorder %s20, 1
      %s169 = scalar_select %p168, %s20, 1
      %s170 = smul.addr %s169, 30
      %s171 = smul.addr %s167, 60
      %s172 = sadd.s32 %s170, %s171
      %s173 = smul.addr %s172, 8
      %s174 = scalar_lea.vmem %s0, %s173
      %p175 = pneg %p50
      %p176 = pneg %p47
      %p177 = pneg %p71
      %p178 = pneg %p68
      %p179 = pneg %p99
      %p180 = pneg %p96
      %s181 = smul.u32 8, %s20
      %p182 = scmp.lt.s32.totalorder %s19, 1
      %s183 = scalar_select %p182, %s19, 1
      %p184 = scmp.lt.s32.totalorder %s181, 15
      %s185 = scalar_select %p184, %s181, 15
      %s186 = smul.addr %s185, 2
      %s187 = smul.addr %s183, 32
      %s188 = sadd.s32 %s186, %s187
      %s189 = smul.addr %s188, 8
      %s190 = scalar_lea.vmem %s2, %s189
      %p191 = pneg %p125
      %p192 = pneg %p122
      %p193 = scmp.lt.s32.totalorder %s19, 1
      %s194 = scalar_select %p193, %s19, 1
      %s195 = smul.addr %s194, 2
      %s196 = scalar_lea.vmem %s3, %s195
      %p197 = scmp.lt.s32.totalorder %s19, 1
      %s198 = scalar_select %p197, %s19, 1
      %p199 = scmp.lt.s32.totalorder %s20, 1
      %s200 = scalar_select %p199, %s20, 1
      %s201 = smul.addr %s200, 30
      %s202 = smul.addr %s198, 60
      %s203 = sadd.s32 %s201, %s202
      %s204 = smul.addr %s203, 8
      %s205 = scalar_lea.vmem %s0, %s204
      %s206 = smul.u32 8, %s20
      %p207 = scmp.lt.s32.totalorder %s19, 1
      %s208 = scalar_select %p207, %s19, 1
      %p209 = scmp.lt.s32.totalorder %s206, 15
      %s210 = scalar_select %p209, %s206, 15
      %s211 = smul.addr %s210, 2
      %s212 = smul.addr %s208, 32
      %s213 = sadd.s32 %s211, %s212
      %s214 = smul.addr %s213, 8
      %s215 = scalar_lea.vmem %s2, %s214
      %s216 = smul.u32 8, %s20
      %p217 = scmp.lt.s32.totalorder %s19, 1
      %s218 = scalar_select %p217, %s19, 1
      %s219 = smul.addr %s218, 2
      %s220 = scalar_lea.vmem %s3, %s219
      %v221 = vld [vmem:[%s205] sm:$0xff]
      %v222 = vld [vmem:[%s205 + $0x8] sm:$0xff]
      %v223 = vld [vmem:[%s205 + $0x18] sm:$0xff]
      %v224 = vld [vmem:[%s205 + $0x20] sm:$0xff]
      %v225 = vld [vmem:[%s205 + $0x30] sm:$0xff]
      %v226 = vld [vmem:[%s205 + $0x38] sm:$0xff]
      %v227 = vld [vmem:[%s205 + $0x48] sm:$0xff]
      %v228 = vld [vmem:[%s205 + $0x50] sm:$0xff]
      %v229 = vld [vmem:[%s205 + $0x60] sm:$0xff]
      %v230 = vld [vmem:[%s205 + $0x68] sm:$0xff]
      %v231 = vld [vmem:[%s205 + $0x78] sm:$0xff]
      %v232 = vld [vmem:[%s205 + $0x80] sm:$0xff]
      %v233 = vld [vmem:[%s205 + $0x90] sm:$0xff]
      %v234 = vld [vmem:[%s205 + $0x98] sm:$0xff]
      %v235 = vld [vmem:[%s205 + $0xa8] sm:$0xff]
      %v236 = vld [vmem:[%s205 + $0xb0] sm:$0xff]
      %v237 = vld [vmem:[%s205 + $0x1] sm:$0xff]
      %v238 = vld [vmem:[%s205 + $0x9] sm:$0xff]
      %v239 = vld [vmem:[%s205 + $0x19] sm:$0xff]
      %v240 = vld [vmem:[%s205 + $0x21] sm:$0xff]
      %v241 = vld [vmem:[%s205 + $0x31] sm:$0xff]
      %v242 = vld [vmem:[%s205 + $0x39] sm:$0xff]
      %v243 = vld [vmem:[%s205 + $0x49] sm:$0xff]
      %v244 = vld [vmem:[%s205 + $0x51] sm:$0xff]
      %v245 = vld [vmem:[%s205 + $0x61] sm:$0xff]
      %v246 = vld [vmem:[%s205 + $0x69] sm:$0xff]
      %v247 = vld [vmem:[%s205 + $0x79] sm:$0xff]
      %v248 = vld [vmem:[%s205 + $0x81] sm:$0xff]
      %v249 = vld [vmem:[%s205 + $0x91] sm:$0xff]
      %v250 = vld [vmem:[%s205 + $0x99] sm:$0xff]
      %v251 = vld [vmem:[%s205 + $0xa9] sm:$0xff]
      %v252 = vld [vmem:[%s205 + $0xb1] sm:$0xff]
      %v253 = vld [vmem:[%s205 + $0x2] sm:$0xff]
      %v254 = vld [vmem:[%s205 + $0xa] sm:$0xff]
      %v255 = vld [vmem:[%s205 + $0x1a] sm:$0xff]
      %v256 = vld [vmem:[%s205 + $0x22] sm:$0xff]
      %v257 = vld [vmem:[%s205 + $0x32] sm:$0xff]
      %v258 = vld [vmem:[%s205 + $0x3a] sm:$0xff]
      %v259 = vld [vmem:[%s205 + $0x4a] sm:$0xff]
      %v260 = vld [vmem:[%s205 + $0x52] sm:$0xff]
      %v261 = vld [vmem:[%s205 + $0x62] sm:$0xff]
      %v262 = vld [vmem:[%s205 + $0x6a] sm:$0xff]
      %v263 = vld [vmem:[%s205 + $0x7a] sm:$0xff]
      %v264 = vld [vmem:[%s205 + $0x82] sm:$0xff]
      %v265 = vld [vmem:[%s205 + $0x92] sm:$0xff]
      %v266 = vld [vmem:[%s205 + $0x9a] sm:$0xff]
      %v267 = vld [vmem:[%s205 + $0xaa] sm:$0xff]
      %v268 = vld [vmem:[%s205 + $0xb2] sm:$0xff]
      %s269 = scalar_lea.vmem %s205, 24
      %v270 = vld [vmem:[%s269] sm:$0xff]
      %v271 = vld [vmem:[%s269 + $0x8] sm:$0xff]
      %v272 = vld [vmem:[%s269 + $0x18] sm:$0xff]
      %v273 = vld [vmem:[%s269 + $0x20] sm:$0xff]
      %v274 = vld [vmem:[%s269 + $0x30] sm:$0xff]
      %v275 = vld [vmem:[%s269 + $0x38] sm:$0xff]
      %v276 = vld [vmem:[%s269 + $0x48] sm:$0xff]
      %v277 = vld [vmem:[%s269 + $0x50] sm:$0xff]
      %v278 = vld [vmem:[%s269 + $0x60] sm:$0xff]
      %v279 = vld [vmem:[%s269 + $0x68] sm:$0xff]
      %v280 = vld [vmem:[%s269 + $0x78] sm:$0xff]
      %v281 = vld [vmem:[%s269 + $0x80] sm:$0xff]
      %v282 = vld [vmem:[%s269 + $0x90] sm:$0xff]
      %v283 = vld [vmem:[%s269 + $0x98] sm:$0xff]
      %v284 = vld [vmem:[%s269 + $0xa8] sm:$0xff]
      %v285 = vld [vmem:[%s269 + $0xb0] sm:$0xff]
      %v286 = vld [vmem:[%s269 + $0x1] sm:$0xff]
      %v287 = vld [vmem:[%s269 + $0x9] sm:$0xff]
      %v288 = vld [vmem:[%s269 + $0x19] sm:$0xff]
      %v289 = vld [vmem:[%s269 + $0x21] sm:$0xff]
      %v290 = vld [vmem:[%s269 + $0x31] sm:$0xff]
      %v291 = vld [vmem:[%s269 + $0x39] sm:$0xff]
      %v292 = vld [vmem:[%s269 + $0x49] sm:$0xff]
      %v293 = vld [vmem:[%s269 + $0x51] sm:$0xff]
      %v294 = vld [vmem:[%s269 + $0x61] sm:$0xff]
      %v295 = vld [vmem:[%s269 + $0x69] sm:$0xff]
      %v296 = vld [vmem:[%s269 + $0x79] sm:$0xff]
      %v297 = vld [vmem:[%s269 + $0x81] sm:$0xff]
      %v298 = vld [vmem:[%s269 + $0x91] sm:$0xff]
      %v299 = vld [vmem:[%s269 + $0x99] sm:$0xff]
      %v300 = vld [vmem:[%s269 + $0xa9] sm:$0xff]
      %v301 = vld [vmem:[%s269 + $0xb1] sm:$0xff]
      %v302 = vld [vmem:[%s269 + $0x2] sm:$0xff]
      %v303 = vld [vmem:[%s269 + $0xa] sm:$0xff]
      %v304 = vld [vmem:[%s269 + $0x1a] sm:$0xff]
      %v305 = vld [vmem:[%s269 + $0x22] sm:$0xff]
      %v306 = vld [vmem:[%s269 + $0x32] sm:$0xff]
      %v307 = vld [vmem:[%s269 + $0x3a] sm:$0xff]
      %v308 = vld [vmem:[%s269 + $0x4a] sm:$0xff]
      %v309 = vld [vmem:[%s269 + $0x52] sm:$0xff]
      %v310 = vld [vmem:[%s269 + $0x62] sm:$0xff]
      %v311 = vld [vmem:[%s269 + $0x6a] sm:$0xff]
      %v312 = vld [vmem:[%s269 + $0x7a] sm:$0xff]
      %v313 = vld [vmem:[%s269 + $0x82] sm:$0xff]
      %v314 = vld [vmem:[%s269 + $0x92] sm:$0xff]
      %v315 = vld [vmem:[%s269 + $0x9a] sm:$0xff]
      %v316 = vld [vmem:[%s269 + $0xaa] sm:$0xff]
      %v317 = vld [vmem:[%s269 + $0xb2] sm:$0xff]
      %s318 = scalar_lea.vmem %s205, 48
      %v319 = vld [vmem:[%s318] sm:$0xff]
      %v320 = vld [vmem:[%s318 + $0x8] sm:$0xff]
      %v321 = vld [vmem:[%s318 + $0x18] sm:$0xff]
      %v322 = vld [vmem:[%s318 + $0x20] sm:$0xff]
      %v323 = vld [vmem:[%s318 + $0x30] sm:$0xff]
      %v324 = vld [vmem:[%s318 + $0x38] sm:$0xff]
      %v325 = vld [vmem:[%s318 + $0x48] sm:$0xff]
      %v326 = vld [vmem:[%s318 + $0x50] sm:$0xff]
      %v327 = vld [vmem:[%s318 + $0x60] sm:$0xff]
      %v328 = vld [vmem:[%s318 + $0x68] sm:$0xff]
      %v329 = vld [vmem:[%s318 + $0x78] sm:$0xff]
      %v330 = vld [vmem:[%s318 + $0x80] sm:$0xff]
      %v331 = vld [vmem:[%s318 + $0x90] sm:$0xff]
      %v332 = vld [vmem:[%s318 + $0x98] sm:$0xff]
      %v333 = vld [vmem:[%s318 + $0xa8] sm:$0xff]
      %v334 = vld [vmem:[%s318 + $0xb0] sm:$0xff]
      %v335 = vld [vmem:[%s318 + $0x1] sm:$0xff]
      %v336 = vld [vmem:[%s318 + $0x9] sm:$0xff]
      %v337 = vld [vmem:[%s318 + $0x19] sm:$0xff]
      %v338 = vld [vmem:[%s318 + $0x21] sm:$0xff]
      %v339 = vld [vmem:[%s318 + $0x31] sm:$0xff]
      %v340 = vld [vmem:[%s318 + $0x39] sm:$0xff]
      %v341 = vld [vmem:[%s318 + $0x49] sm:$0xff]
      %v342 = vld [vmem:[%s318 + $0x51] sm:$0xff]
      %v343 = vld [vmem:[%s318 + $0x61] sm:$0xff]
      %v344 = vld [vmem:[%s318 + $0x69] sm:$0xff]
      %v345 = vld [vmem:[%s318 + $0x79] sm:$0xff]
      %v346 = vld [vmem:[%s318 + $0x81] sm:$0xff]
      %v347 = vld [vmem:[%s318 + $0x91] sm:$0xff]
      %v348 = vld [vmem:[%s318 + $0x99] sm:$0xff]
      %v349 = vld [vmem:[%s318 + $0xa9] sm:$0xff]
      %v350 = vld [vmem:[%s318 + $0xb1] sm:$0xff]
      %v351 = vld [vmem:[%s318 + $0x2] sm:$0xff]
      %v352 = vld [vmem:[%s318 + $0xa] sm:$0xff]
      %v353 = vld [vmem:[%s318 + $0x1a] sm:$0xff]
      %v354 = vld [vmem:[%s318 + $0x22] sm:$0xff]
      %v355 = vld [vmem:[%s318 + $0x32] sm:$0xff]
      %v356 = vld [vmem:[%s318 + $0x3a] sm:$0xff]
      %v357 = vld [vmem:[%s318 + $0x4a] sm:$0xff]
      %v358 = vld [vmem:[%s318 + $0x52] sm:$0xff]
      %v359 = vld [vmem:[%s318 + $0x62] sm:$0xff]
      %v360 = vld [vmem:[%s318 + $0x6a] sm:$0xff]
      %v361 = vld [vmem:[%s318 + $0x7a] sm:$0xff]
      %v362 = vld [vmem:[%s318 + $0x82] sm:$0xff]
      %v363 = vld [vmem:[%s318 + $0x92] sm:$0xff]
      %v364 = vld [vmem:[%s318 + $0x9a] sm:$0xff]
      %v365 = vld [vmem:[%s318 + $0xaa] sm:$0xff]
      %v366 = vld [vmem:[%s318 + $0xb2] sm:$0xff]
      %383 = vrot.lane.b32.xlu0 %v237, 4
      %v384 = vpop.permute.xlu0 %383
      %385 = vrot.lane.b32.xlu0 %v238, 4
      %v386 = vpop.permute.xlu0 %385
      %387 = vrot.lane.b32.xlu0 %v239, 4
      %v388 = vpop.permute.xlu0 %387
      %389 = vrot.lane.b32.xlu0 %v240, 4
      %v390 = vpop.permute.xlu0 %389
      %391 = vrot.lane.b32.xlu0 %v241, 4
      %v392 = vpop.permute.xlu0 %391
      %393 = vrot.lane.b32.xlu0 %v242, 4
      %v394 = vpop.permute.xlu0 %393
      %395 = vrot.lane.b32.xlu0 %v243, 4
      %v396 = vpop.permute.xlu0 %395
      %397 = vrot.lane.b32.xlu0 %v244, 4
      %v398 = vpop.permute.xlu0 %397
      %399 = vrot.lane.b32.xlu0 %v245, 4
      %v400 = vpop.permute.xlu0 %399
      %401 = vrot.lane.b32.xlu0 %v246, 4
      %v402 = vpop.permute.xlu0 %401
      %403 = vrot.lane.b32.xlu0 %v247, 4
      %v404 = vpop.permute.xlu0 %403
      %405 = vrot.lane.b32.xlu0 %v248, 4
      %v406 = vpop.permute.xlu0 %405
      %407 = vrot.lane.b32.xlu0 %v249, 4
      %v408 = vpop.permute.xlu0 %407
      %409 = vrot.lane.b32.xlu0 %v250, 4
      %v410 = vpop.permute.xlu0 %409
      %411 = vrot.lane.b32.xlu0 %v251, 4
      %v412 = vpop.permute.xlu0 %411
      %413 = vrot.lane.b32.xlu0 %v252, 4
      %v414 = vpop.permute.xlu0 %413
      %447 = vrot.lane.b32.xlu0 %v253, 8
      %v448 = vpop.permute.xlu0 %447
      %449 = vrot.lane.b32.xlu0 %v254, 8
      %v450 = vpop.permute.xlu0 %449
      %451 = vrot.lane.b32.xlu0 %v255, 8
      %v452 = vpop.permute.xlu0 %451
      %453 = vrot.lane.b32.xlu0 %v256, 8
      %v454 = vpop.permute.xlu0 %453
      %455 = vrot.lane.b32.xlu0 %v257, 8
      %v456 = vpop.permute.xlu0 %455
      %457 = vrot.lane.b32.xlu0 %v258, 8
      %v458 = vpop.permute.xlu0 %457
      %459 = vrot.lane.b32.xlu0 %v259, 8
      %v460 = vpop.permute.xlu0 %459
      %461 = vrot.lane.b32.xlu0 %v260, 8
      %v462 = vpop.permute.xlu0 %461
      %463 = vrot.lane.b32.xlu0 %v261, 8
      %v464 = vpop.permute.xlu0 %463
      %465 = vrot.lane.b32.xlu0 %v262, 8
      %v466 = vpop.permute.xlu0 %465
      %467 = vrot.lane.b32.xlu0 %v263, 8
      %v468 = vpop.permute.xlu0 %467
      %469 = vrot.lane.b32.xlu0 %v264, 8
      %v470 = vpop.permute.xlu0 %469
      %471 = vrot.lane.b32.xlu0 %v265, 8
      %v472 = vpop.permute.xlu0 %471
      %473 = vrot.lane.b32.xlu0 %v266, 8
      %v474 = vpop.permute.xlu0 %473
      %475 = vrot.lane.b32.xlu0 %v267, 8
      %v476 = vpop.permute.xlu0 %475
      %477 = vrot.lane.b32.xlu0 %v268, 8
      %v478 = vpop.permute.xlu0 %477
      %511 = vrot.lane.b32.xlu0 %v270, 12
      %v512 = vpop.permute.xlu0 %511
      %513 = vrot.lane.b32.xlu0 %v271, 12
      %v514 = vpop.permute.xlu0 %513
      %515 = vrot.lane.b32.xlu0 %v272, 12
      %v516 = vpop.permute.xlu0 %515
      %517 = vrot.lane.b32.xlu0 %v273, 12
      %v518 = vpop.permute.xlu0 %517
      %519 = vrot.lane.b32.xlu0 %v274, 12
      %v520 = vpop.permute.xlu0 %519
      %521 = vrot.lane.b32.xlu0 %v275, 12
      %v522 = vpop.permute.xlu0 %521
      %523 = vrot.lane.b32.xlu0 %v276, 12
      %v524 = vpop.permute.xlu0 %523
      %525 = vrot.lane.b32.xlu0 %v277, 12
      %v526 = vpop.permute.xlu0 %525
      %527 = vrot.lane.b32.xlu0 %v278, 12
      %v528 = vpop.permute.xlu0 %527
      %529 = vrot.lane.b32.xlu0 %v279, 12
      %v530 = vpop.permute.xlu0 %529
      %531 = vrot.lane.b32.xlu0 %v280, 12
      %v532 = vpop.permute.xlu0 %531
      %533 = vrot.lane.b32.xlu0 %v281, 12
      %v534 = vpop.permute.xlu0 %533
      %535 = vrot.lane.b32.xlu0 %v282, 12
      %v536 = vpop.permute.xlu0 %535
      %537 = vrot.lane.b32.xlu0 %v283, 12
      %v538 = vpop.permute.xlu0 %537
      %539 = vrot.lane.b32.xlu0 %v284, 12
      %v540 = vpop.permute.xlu0 %539
      %541 = vrot.lane.b32.xlu0 %v285, 12
      %v542 = vpop.permute.xlu0 %541
      %575 = vrot.lane.b32.xlu0 %v286, 16
      %v576 = vpop.permute.xlu0 %575
      %577 = vrot.lane.b32.xlu0 %v287, 16
      %v578 = vpop.permute.xlu0 %577
      %579 = vrot.lane.b32.xlu0 %v288, 16
      %v580 = vpop.permute.xlu0 %579
      %581 = vrot.lane.b32.xlu0 %v289, 16
      %v582 = vpop.permute.xlu0 %581
      %583 = vrot.lane.b32.xlu0 %v290, 16
      %v584 = vpop.permute.xlu0 %583
      %585 = vrot.lane.b32.xlu0 %v291, 16
      %v586 = vpop.permute.xlu0 %585
      %587 = vrot.lane.b32.xlu0 %v292, 16
      %v588 = vpop.permute.xlu0 %587
      %589 = vrot.lane.b32.xlu0 %v293, 16
      %v590 = vpop.permute.xlu0 %589
      %591 = vrot.lane.b32.xlu0 %v294, 16
      %v592 = vpop.permute.xlu0 %591
      %593 = vrot.lane.b32.xlu0 %v295, 16
      %v594 = vpop.permute.xlu0 %593
      %595 = vrot.lane.b32.xlu0 %v296, 16
      %v596 = vpop.permute.xlu0 %595
      %597 = vrot.lane.b32.xlu0 %v297, 16
      %v598 = vpop.permute.xlu0 %597
      %599 = vrot.lane.b32.xlu0 %v298, 16
      %v600 = vpop.permute.xlu0 %599
      %601 = vrot.lane.b32.xlu0 %v299, 16
      %v602 = vpop.permute.xlu0 %601
      %603 = vrot.lane.b32.xlu0 %v300, 16
      %v604 = vpop.permute.xlu0 %603
      %605 = vrot.lane.b32.xlu0 %v301, 16
      %v606 = vpop.permute.xlu0 %605
      %639 = vrot.lane.b32.xlu0 %v302, 20
      %v640 = vpop.permute.xlu0 %639
      %641 = vrot.lane.b32.xlu0 %v303, 20
      %v642 = vpop.permute.xlu0 %641
      %643 = vrot.lane.b32.xlu0 %v304, 20
      %v644 = vpop.permute.xlu0 %643
      %645 = vrot.lane.b32.xlu0 %v305, 20
      %v646 = vpop.permute.xlu0 %645
      %647 = vrot.lane.b32.xlu0 %v306, 20
      %v648 = vpop.permute.xlu0 %647
      %649 = vrot.lane.b32.xlu0 %v307, 20
      %v650 = vpop.permute.xlu0 %649
      %651 = vrot.lane.b32.xlu0 %v308, 20
      %v652 = vpop.permute.xlu0 %651
      %653 = vrot.lane.b32.xlu0 %v309, 20
      %v654 = vpop.permute.xlu0 %653
      %655 = vrot.lane.b32.xlu0 %v310, 20
      %v656 = vpop.permute.xlu0 %655
      %657 = vrot.lane.b32.xlu0 %v311, 20
      %v658 = vpop.permute.xlu0 %657
      %659 = vrot.lane.b32.xlu0 %v312, 20
      %v660 = vpop.permute.xlu0 %659
      %661 = vrot.lane.b32.xlu0 %v313, 20
      %v662 = vpop.permute.xlu0 %661
      %663 = vrot.lane.b32.xlu0 %v314, 20
      %v664 = vpop.permute.xlu0 %663
      %665 = vrot.lane.b32.xlu0 %v315, 20
      %v666 = vpop.permute.xlu0 %665
      %667 = vrot.lane.b32.xlu0 %v316, 20
      %v668 = vpop.permute.xlu0 %667
      %669 = vrot.lane.b32.xlu0 %v317, 20
      %v670 = vpop.permute.xlu0 %669
      %703 = vrot.lane.b32.xlu0 %v319, 24
      %v704 = vpop.permute.xlu0 %703
      %705 = vrot.lane.b32.xlu0 %v320, 24
      %v706 = vpop.permute.xlu0 %705
      %707 = vrot.lane.b32.xlu0 %v321, 24
      %v708 = vpop.permute.xlu0 %707
      %709 = vrot.lane.b32.xlu0 %v322, 24
      %v710 = vpop.permute.xlu0 %709
      %711 = vrot.lane.b32.xlu0 %v323, 24
      %v712 = vpop.permute.xlu0 %711
      %713 = vrot.lane.b32.xlu0 %v324, 24
      %v714 = vpop.permute.xlu0 %713
      %715 = vrot.lane.b32.xlu0 %v325, 24
      %v716 = vpop.permute.xlu0 %715
      %717 = vrot.lane.b32.xlu0 %v326, 24
      %v718 = vpop.permute.xlu0 %717
      %719 = vrot.lane.b32.xlu0 %v327, 24
      %v720 = vpop.permute.xlu0 %719
      %721 = vrot.lane.b32.xlu0 %v328, 24
      %v722 = vpop.permute.xlu0 %721
      %723 = vrot.lane.b32.xlu0 %v329, 24
      %v724 = vpop.permute.xlu0 %723
      %725 = vrot.lane.b32.xlu0 %v330, 24
      %v726 = vpop.permute.xlu0 %725
      %727 = vrot.lane.b32.xlu0 %v331, 24
      %v728 = vpop.permute.xlu0 %727
      %729 = vrot.lane.b32.xlu0 %v332, 24
      %v730 = vpop.permute.xlu0 %729
      %731 = vrot.lane.b32.xlu0 %v333, 24
      %v732 = vpop.permute.xlu0 %731
      %733 = vrot.lane.b32.xlu0 %v334, 24
      %v734 = vpop.permute.xlu0 %733
      %767 = vrot.lane.b32.xlu0 %v335, 28
      %v768 = vpop.permute.xlu0 %767
      %769 = vrot.lane.b32.xlu0 %v336, 28
      %v770 = vpop.permute.xlu0 %769
      %771 = vrot.lane.b32.xlu0 %v337, 28
      %v772 = vpop.permute.xlu0 %771
      %773 = vrot.lane.b32.xlu0 %v338, 28
      %v774 = vpop.permute.xlu0 %773
      %775 = vrot.lane.b32.xlu0 %v339, 28
      %v776 = vpop.permute.xlu0 %775
      %777 = vrot.lane.b32.xlu0 %v340, 28
      %v778 = vpop.permute.xlu0 %777
      %779 = vrot.lane.b32.xlu0 %v341, 28
      %v780 = vpop.permute.xlu0 %779
      %781 = vrot.lane.b32.xlu0 %v342, 28
      %v782 = vpop.permute.xlu0 %781
      %783 = vrot.lane.b32.xlu0 %v343, 28
      %v784 = vpop.permute.xlu0 %783
      %785 = vrot.lane.b32.xlu0 %v344, 28
      %v786 = vpop.permute.xlu0 %785
      %787 = vrot.lane.b32.xlu0 %v345, 28
      %v788 = vpop.permute.xlu0 %787
      %789 = vrot.lane.b32.xlu0 %v346, 28
      %v790 = vpop.permute.xlu0 %789
      %791 = vrot.lane.b32.xlu0 %v347, 28
      %v792 = vpop.permute.xlu0 %791
      %793 = vrot.lane.b32.xlu0 %v348, 28
      %v794 = vpop.permute.xlu0 %793
      %795 = vrot.lane.b32.xlu0 %v349, 28
      %v796 = vpop.permute.xlu0 %795
      %797 = vrot.lane.b32.xlu0 %v350, 28
      %v798 = vpop.permute.xlu0 %797
      %831 = vrot.lane.b32.xlu0 %v351, 32
      %v832 = vpop.permute.xlu0 %831
      %833 = vrot.lane.b32.xlu0 %v352, 32
      %v834 = vpop.permute.xlu0 %833
      %835 = vrot.lane.b32.xlu0 %v353, 32
      %v836 = vpop.permute.xlu0 %835
      %837 = vrot.lane.b32.xlu0 %v354, 32
      %v838 = vpop.permute.xlu0 %837
      %839 = vrot.lane.b32.xlu0 %v355, 32
      %v840 = vpop.permute.xlu0 %839
      %841 = vrot.lane.b32.xlu0 %v356, 32
      %v842 = vpop.permute.xlu0 %841
      %843 = vrot.lane.b32.xlu0 %v357, 32
      %v844 = vpop.permute.xlu0 %843
      %845 = vrot.lane.b32.xlu0 %v358, 32
      %v846 = vpop.permute.xlu0 %845
      %847 = vrot.lane.b32.xlu0 %v359, 32
      %v848 = vpop.permute.xlu0 %847
      %849 = vrot.lane.b32.xlu0 %v360, 32
      %v850 = vpop.permute.xlu0 %849
      %851 = vrot.lane.b32.xlu0 %v361, 32
      %v852 = vpop.permute.xlu0 %851
      %853 = vrot.lane.b32.xlu0 %v362, 32
      %v854 = vpop.permute.xlu0 %853
      %855 = vrot.lane.b32.xlu0 %v363, 32
      %v856 = vpop.permute.xlu0 %855
      %857 = vrot.lane.b32.xlu0 %v364, 32
      %v858 = vpop.permute.xlu0 %857
      %859 = vrot.lane.b32.xlu0 %v365, 32
      %v860 = vpop.permute.xlu0 %859
      %861 = vrot.lane.b32.xlu0 %v366, 32
      %v862 = vpop.permute.xlu0 %861
      %vm879 = vcmask 31744
      %v880 = vsel %vm879, %v221, %v384
      %v881 = vsel %vm879, %v222, %v386
      %v882 = vsel %vm879, %v223, %v388
      %v883 = vsel %vm879, %v224, %v390
      %v884 = vsel %vm879, %v225, %v392
      %v885 = vsel %vm879, %v226, %v394
      %v886 = vsel %vm879, %v227, %v396
      %v887 = vsel %vm879, %v228, %v398
      %v888 = vsel %vm879, %v229, %v400
      %v889 = vsel %vm879, %v230, %v402
      %v890 = vsel %vm879, %v231, %v404
      %v891 = vsel %vm879, %v232, %v406
      %v892 = vsel %vm879, %v233, %v408
      %v893 = vsel %vm879, %v234, %v410
      %v894 = vsel %vm879, %v235, %v412
      %v895 = vsel %vm879, %v236, %v414
      %vm896 = vcmask 64512
      %v897 = vsel %vm896, %v880, %v448
      %v898 = vsel %vm896, %v881, %v450
      %v899 = vsel %vm896, %v882, %v452
      %v900 = vsel %vm896, %v883, %v454
      %v901 = vsel %vm896, %v884, %v456
      %v902 = vsel %vm896, %v885, %v458
      %v903 = vsel %vm896, %v886, %v460
      %v904 = vsel %vm896, %v887, %v462
      %v905 = vsel %vm896, %v888, %v464
      %v906 = vsel %vm896, %v889, %v466
      %v907 = vsel %vm896, %v890, %v468
      %v908 = vsel %vm896, %v891, %v470
      %v909 = vsel %vm896, %v892, %v472
      %v910 = vsel %vm896, %v893, %v474
      %v911 = vsel %vm896, %v894, %v476
      %v912 = vsel %vm896, %v895, %v478
      %vm913 = vcmask 97280
      %v914 = vsel %vm913, %v897, %v512
      %v915 = vsel %vm913, %v898, %v514
      %v916 = vsel %vm913, %v899, %v516
      %v917 = vsel %vm913, %v900, %v518
      %v918 = vsel %vm913, %v901, %v520
      %v919 = vsel %vm913, %v902, %v522
      %v920 = vsel %vm913, %v903, %v524
      %v921 = vsel %vm913, %v904, %v526
      %v922 = vsel %vm913, %v905, %v528
      %v923 = vsel %vm913, %v906, %v530
      %v924 = vsel %vm913, %v907, %v532
      %v925 = vsel %vm913, %v908, %v534
      %v926 = vsel %vm913, %v909, %v536
      %v927 = vsel %vm913, %v910, %v538
      %v928 = vsel %vm913, %v911, %v540
      %v929 = vsel %vm913, %v912, %v542
      %vm930 = vcmask 130048
      %v931 = vsel %vm930, %v914, %v576
      %v932 = vsel %vm930, %v915, %v578
      %v933 = vsel %vm930, %v916, %v580
      %v934 = vsel %vm930, %v917, %v582
      %v935 = vsel %vm930, %v918, %v584
      %v936 = vsel %vm930, %v919, %v586
      %v937 = vsel %vm930, %v920, %v588
      %v938 = vsel %vm930, %v921, %v590
      %v939 = vsel %vm930, %v922, %v592
      %v940 = vsel %vm930, %v923, %v594
      %v941 = vsel %vm930, %v924, %v596
      %v942 = vsel %vm930, %v925, %v598
      %v943 = vsel %vm930, %v926, %v600
      %v944 = vsel %vm930, %v927, %v602
      %v945 = vsel %vm930, %v928, %v604
      %v946 = vsel %vm930, %v929, %v606
      %vm947 = vcmask 162816
      %v948 = vsel %vm947, %v931, %v640
      %v949 = vsel %vm947, %v932, %v642
      %v950 = vsel %vm947, %v933, %v644
      %v951 = vsel %vm947, %v934, %v646
      %v952 = vsel %vm947, %v935, %v648
      %v953 = vsel %vm947, %v936, %v650
      %v954 = vsel %vm947, %v937, %v652
      %v955 = vsel %vm947, %v938, %v654
      %v956 = vsel %vm947, %v939, %v656
      %v957 = vsel %vm947, %v940, %v658
      %v958 = vsel %vm947, %v941, %v660
      %v959 = vsel %vm947, %v942, %v662
      %v960 = vsel %vm947, %v943, %v664
      %v961 = vsel %vm947, %v944, %v666
      %v962 = vsel %vm947, %v945, %v668
      %v963 = vsel %vm947, %v946, %v670
      %vm964 = vcmask 195584
      %v965 = vsel %vm964, %v948, %v704
      %v966 = vsel %vm964, %v949, %v706
      %v967 = vsel %vm964, %v950, %v708
      %v968 = vsel %vm964, %v951, %v710
      %v969 = vsel %vm964, %v952, %v712
      %v970 = vsel %vm964, %v953, %v714
      %v971 = vsel %vm964, %v954, %v716
      %v972 = vsel %vm964, %v955, %v718
      %v973 = vsel %vm964, %v956, %v720
      %v974 = vsel %vm964, %v957, %v722
      %v975 = vsel %vm964, %v958, %v724
      %v976 = vsel %vm964, %v959, %v726
      %v977 = vsel %vm964, %v960, %v728
      %v978 = vsel %vm964, %v961, %v730
      %v979 = vsel %vm964, %v962, %v732
      %v980 = vsel %vm964, %v963, %v734
      %vm981 = vcmask 228352
      %v982 = vsel %vm981, %v965, %v768
      %v983 = vsel %vm981, %v966, %v770
      %v984 = vsel %vm981, %v967, %v772
      %v985 = vsel %vm981, %v968, %v774
      %v986 = vsel %vm981, %v969, %v776
      %v987 = vsel %vm981, %v970, %v778
      %v988 = vsel %vm981, %v971, %v780
      %v989 = vsel %vm981, %v972, %v782
      %v990 = vsel %vm981, %v973, %v784
      %v991 = vsel %vm981, %v974, %v786
      %v992 = vsel %vm981, %v975, %v788
      %v993 = vsel %vm981, %v976, %v790
      %v994 = vsel %vm981, %v977, %v792
      %v995 = vsel %vm981, %v978, %v794
      %v996 = vsel %vm981, %v979, %v796
      %v997 = vsel %vm981, %v980, %v798
      %vm998 = vcmask 261120
      %v999 = vsel %vm998, %v982, %v832
      %v1000 = vsel %vm998, %v983, %v834
      %v1001 = vsel %vm998, %v984, %v836
      %v1002 = vsel %vm998, %v985, %v838
      %v1003 = vsel %vm998, %v986, %v840
      %v1004 = vsel %vm998, %v987, %v842
      %v1005 = vsel %vm998, %v988, %v844
      %v1006 = vsel %vm998, %v989, %v846
      %v1007 = vsel %vm998, %v990, %v848
      %v1008 = vsel %vm998, %v991, %v850
      %v1009 = vsel %vm998, %v992, %v852
      %v1010 = vsel %vm998, %v993, %v854
      %v1011 = vsel %vm998, %v994, %v856
      %v1012 = vsel %vm998, %v995, %v858
      %v1013 = vsel %vm998, %v996, %v860
      %v1014 = vsel %vm998, %v997, %v862
      %v1015 = vld [vmem:[%s1] sm:$0xff]
      %v1016 = vld [vmem:[%s1 + $0x8] sm:$0xff]
      %v1017 = vld [vmem:[%s1 + $0x10] sm:$0xff]
      %v1018 = vld [vmem:[%s1 + $0x18] sm:$0xff]
      %v1019 = vld [vmem:[%s1 + $0x20] sm:$0xf]
      %vm1020 = vcmask 293888
      %v1022 = vsel %vm1020, %v999, 0
      %v1025 = vsel %vm1020, %v1000, 0
      %v1028 = vsel %vm1020, %v1001, 0
      %v1031 = vsel %vm1020, %v1002, 0
      %v1034 = vsel %vm1020, %v1003, 0
      %v1037 = vsel %vm1020, %v1004, 0
      %v1040 = vsel %vm1020, %v1005, 0
      %v1043 = vsel %vm1020, %v1006, 0
      %v1046 = vsel %vm1020, %v1007, 0
      %v1049 = vsel %vm1020, %v1008, 0
      %v1052 = vsel %vm1020, %v1009, 0
      %v1055 = vsel %vm1020, %v1010, 0
      %v1058 = vsel %vm1020, %v1011, 0
      %v1061 = vsel %vm1020, %v1012, 0
      %v1064 = vsel %vm1020, %v1013, 0
      %v1067 = vsel %vm1020, %v1014, 0
      %vm1069 = vcmask 1043456
      %v1071 = vsel %vm1069, %v1019, 0
      %1073 = vmatprep.subr.mxu0 0.0
      %1074 = vmatpush1.msra.mxu0 0.0
      %1075 = vmatprep.subr.mxu0 0.0
      %1076 = vmatpush1.msra.mxu0 0.0
      %1077 = vmatprep.subr.mxu0 0.0
      %1078 = vmatpush1.msra.mxu0 0.0
      %1079 = vmatprep.subr.mxu0 0.0
      %1080 = vmatpush1.msra.mxu0 0.0
      %1081 = vmatprep.subr.mxu0 0.0
      %1082 = vmatpush1.msra.mxu0 0.0
      %1083 = vmatprep.subr.mxu0 0.0
      %1084 = vmatpush1.msra.mxu0 0.0
      %1085 = vmatprep.subr.mxu0 0.0
      %1086 = vmatpush1.msra.mxu0 0.0
      %1087 = vmatprep.subr.mxu0 0.0
      %1088 = vmatpush1.msra.mxu0 0.0
      %1089 = vmatprep.subr.mxu0 0.0
      %1090 = vmatpush1.msra.mxu0 0.0
      %1091 = vmatprep.subr.mxu0 0.0
      %1092 = vmatpush1.msra.mxu0 0.0
      %1093 = vmatprep.subr.mxu0 0.0
      %1094 = vmatpush1.msra.mxu0 0.0
      %1095 = vmatprep.subr.mxu0 0.0
      %1096 = vmatpush1.msra.mxu0 %v1071
      %1097 = vmatprep.subr.mxu0 0.0
      %1098 = vmatpush1.msra.mxu0 %v1018
      %1099 = vmatprep.subr.mxu0 0.0
      %1100 = vmatpush1.msra.mxu0 %v1017
      %1101 = vmatprep.subr.mxu0 0.0
      %1102 = vmatpush1.msra.mxu0 %v1016
      %1103 = vmatprep.subr.mxu0 0.0
      %1104 = vmatpush1.msra.mxu0 %v1015
      %1105 = vmatprep.subr.mxu0 0.0
      %1106 = vmatpush2.msra.mxu0 0.0
      %1107 = vmatprep.subr.mxu0 0.0
      %1108 = vmatpush2.msra.mxu0 0.0
      %1109 = vmatprep.subr.mxu0 0.0
      %1110 = vmatpush2.msra.mxu0 0.0
      %1111 = vmatprep.subr.mxu0 0.0
      %1112 = vmatpush2.msra.mxu0 0.0
      %1113 = vmatprep.subr.mxu0 0.0
      %1114 = vmatpush2.msra.mxu0 0.0
      %1115 = vmatprep.subr.mxu0 0.0
      %1116 = vmatpush2.msra.mxu0 0.0
      %1117 = vmatprep.subr.mxu0 0.0
      %1118 = vmatpush2.msra.mxu0 0.0
      %1119 = vmatprep.subr.mxu0 0.0
      %1120 = vmatpush2.msra.mxu0 0.0
      %1121 = vmatprep.subr.mxu0 0.0
      %1122 = vmatpush2.msra.mxu0 0.0
      %1123 = vmatprep.subr.mxu0 0.0
      %1124 = vmatpush2.msra.mxu0 0.0
      %1125 = vmatprep.subr.mxu0 0.0
      %1126 = vmatpush2.msra.mxu0 0.0
      %1127 = vmatprep.subr.mxu0 0.0
      %1128 = vmatpush2.msra.mxu0 0.0
      %1129 = vmatprep.subr.mxu0 0.0
      %1130 = vmatpush2.msra.mxu0 0.0
      %1131 = vmatprep.subr.mxu0 0.0
      %1132 = vmatpush2.msra.mxu0 0.0
      %1133 = vmatprep.subr.mxu0 0.0
      %1134 = vmatpush2.msra.mxu0 0.0
      %1135 = vmatprep.subr.mxu0 0.0
      %1136 = vmatpush2.msra.mxu0 0.0
      %1137 = vmatprep.mubr.f32.mxu0 0.0
      %1138 = vmatmul.mubr.f32.gmra.mxu0 %v1022
      %v1139 = vpop.f32.mrf.mxu0
      %v1140 = vadd.f32 0.0, %v1139
      %v1141 = vpop.f32.mrf.mxu0
      %1142 = vmatprep.mubr.f32.mxu0 0.0
      %1143 = vmatmul.mubr.f32.gmra.mxu0 %v1025
      %v1144 = vpop.f32.mrf.mxu0
      %v1145 = vadd.f32 0.0, %v1144
      %v1146 = vpop.f32.mrf.mxu0
      %1147 = vmatprep.mubr.f32.mxu0 0.0
      %1148 = vmatmul.mubr.f32.gmra.mxu0 %v1028
      %v1149 = vpop.f32.mrf.mxu0
      %v1150 = vadd.f32 0.0, %v1149
      %v1151 = vpop.f32.mrf.mxu0
      %1152 = vmatprep.mubr.f32.mxu0 0.0
      %1153 = vmatmul.mubr.f32.gmra.mxu0 %v1031
      %v1154 = vpop.f32.mrf.mxu0
      %v1155 = vadd.f32 0.0, %v1154
      %v1156 = vpop.f32.mrf.mxu0
      %1157 = vmatprep.mubr.f32.mxu0 0.0
      %1158 = vmatmul.mubr.f32.gmra.mxu0 %v1034
      %v1159 = vpop.f32.mrf.mxu0
      %v1160 = vadd.f32 0.0, %v1159
      %v1161 = vpop.f32.mrf.mxu0
      %1162 = vmatprep.mubr.f32.mxu0 0.0
      %1163 = vmatmul.mubr.f32.gmra.mxu0 %v1037
      %v1164 = vpop.f32.mrf.mxu0
      %v1165 = vadd.f32 0.0, %v1164
      %v1166 = vpop.f32.mrf.mxu0
      %1167 = vmatprep.mubr.f32.mxu0 0.0
      %1168 = vmatmul.mubr.f32.gmra.mxu0 %v1040
      %v1169 = vpop.f32.mrf.mxu0
      %v1170 = vadd.f32 0.0, %v1169
      %v1171 = vpop.f32.mrf.mxu0
      %1172 = vmatprep.mubr.f32.mxu0 0.0
      %1173 = vmatmul.mubr.f32.gmra.mxu0 %v1043
      %v1174 = vpop.f32.mrf.mxu0
      %v1175 = vadd.f32 0.0, %v1174
      %v1176 = vpop.f32.mrf.mxu0
      %1177 = vmatprep.mubr.f32.mxu0 0.0
      %1178 = vmatmul.mubr.f32.gmra.mxu0 %v1046
      %v1179 = vpop.f32.mrf.mxu0
      %v1180 = vadd.f32 0.0, %v1179
      %v1181 = vpop.f32.mrf.mxu0
      %1182 = vmatprep.mubr.f32.mxu0 0.0
      %1183 = vmatmul.mubr.f32.gmra.mxu0 %v1049
      %v1184 = vpop.f32.mrf.mxu0
      %v1185 = vadd.f32 0.0, %v1184
      %v1186 = vpop.f32.mrf.mxu0
      %1187 = vmatprep.mubr.f32.mxu0 0.0
      %1188 = vmatmul.mubr.f32.gmra.mxu0 %v1052
      %v1189 = vpop.f32.mrf.mxu0
      %v1190 = vadd.f32 0.0, %v1189
      %v1191 = vpop.f32.mrf.mxu0
      %1192 = vmatprep.mubr.f32.mxu0 0.0
      %1193 = vmatmul.mubr.f32.gmra.mxu0 %v1055
      %v1194 = vpop.f32.mrf.mxu0
      %v1195 = vadd.f32 0.0, %v1194
      %v1196 = vpop.f32.mrf.mxu0
      %1197 = vmatprep.mubr.f32.mxu0 0.0
      %1198 = vmatmul.mubr.f32.gmra.mxu0 %v1058
      %v1199 = vpop.f32.mrf.mxu0
      %v1200 = vadd.f32 0.0, %v1199
      %v1201 = vpop.f32.mrf.mxu0
      %1202 = vmatprep.mubr.f32.mxu0 0.0
      %1203 = vmatmul.mubr.f32.gmra.mxu0 %v1061
      %v1204 = vpop.f32.mrf.mxu0
      %v1205 = vadd.f32 0.0, %v1204
      %v1206 = vpop.f32.mrf.mxu0
      %1207 = vmatprep.mubr.f32.mxu0 0.0
      %1208 = vmatmul.mubr.f32.gmra.mxu0 %v1064
      %v1209 = vpop.f32.mrf.mxu0
      %v1210 = vadd.f32 0.0, %v1209
      %v1211 = vpop.f32.mrf.mxu0
      %1212 = vmatprep.mubr.f32.mxu0 0.0
      %1213 = vmatmul.mubr.f32.gmra.mxu0 %v1067
      %v1214 = vpop.f32.mrf.mxu0
      %v1215 = vadd.f32 0.0, %v1214
      %v1216 = vpop.f32.mrf.mxu0
      %1217 = vdwg.mxu0
      %v1218 = vsel %vm998, %v1140, 0.0
      %v1219 = vsel %vm998, %v1145, 0.0
      %v1220 = vadd.f32 %v1218, %v1219
      %v1221 = vsel %vm998, %v1150, 0.0
      %v1222 = vadd.f32 %v1220, %v1221
      %v1223 = vsel %vm998, %v1155, 0.0
      %v1224 = vadd.f32 %v1222, %v1223
      %v1225 = vsel %vm998, %v1160, 0.0
      %v1226 = vadd.f32 %v1224, %v1225
      %v1227 = vsel %vm998, %v1165, 0.0
      %v1228 = vadd.f32 %v1226, %v1227
      %v1229 = vsel %vm998, %v1170, 0.0
      %v1230 = vadd.f32 %v1228, %v1229
      %v1231 = vsel %vm998, %v1175, 0.0
      %v1232 = vadd.f32 %v1230, %v1231
      %v1233 = vsel %vm998, %v1180, 0.0
      %v1234 = vadd.f32 %v1232, %v1233
      %v1235 = vsel %vm998, %v1185, 0.0
      %v1236 = vadd.f32 %v1234, %v1235
      %v1237 = vsel %vm998, %v1190, 0.0
      %v1238 = vadd.f32 %v1236, %v1237
      %v1239 = vsel %vm998, %v1195, 0.0
      %v1240 = vadd.f32 %v1238, %v1239
      %v1241 = vsel %vm998, %v1200, 0.0
      %v1242 = vadd.f32 %v1240, %v1241
      %v1243 = vsel %vm998, %v1205, 0.0
      %v1244 = vadd.f32 %v1242, %v1243
      %v1245 = vsel %vm998, %v1210, 0.0
      %v1246 = vadd.f32 %v1244, %v1245
      %v1247 = vsel %vm998, %v1215, 0.0
      %v1248 = vadd.f32 %v1246, %v1247
      %v1249 = vrot.slane %v1248, 4
      %v1250 = vadd.f32 %v1248, %v1249
      %v1251 = vrot.slane %v1250, 2
      %v1252 = vadd.f32 %v1250, %v1251
      %v1253 = vrot.slane %v1252, 1
      %v1254 = vadd.f32 %v1252, %v1253
      %v1255 = vmul.f32 %v1140, %v1140
      %v1256 = vmul.f32 %v1145, %v1145
      %v1257 = vmul.f32 %v1150, %v1150
      %v1258 = vmul.f32 %v1155, %v1155
      %v1259 = vmul.f32 %v1160, %v1160
      %v1260 = vmul.f32 %v1165, %v1165
      %v1261 = vmul.f32 %v1170, %v1170
      %v1262 = vmul.f32 %v1175, %v1175
      %v1263 = vmul.f32 %v1180, %v1180
      %v1264 = vmul.f32 %v1185, %v1185
      %v1265 = vmul.f32 %v1190, %v1190
      %v1266 = vmul.f32 %v1195, %v1195
      %v1267 = vmul.f32 %v1200, %v1200
      %v1268 = vmul.f32 %v1205, %v1205
      %v1269 = vmul.f32 %v1210, %v1210
      %v1270 = vmul.f32 %v1215, %v1215
      %v1271 = vsel %vm998, %v1255, 0.0
      %v1272 = vsel %vm998, %v1256, 0.0
      %v1273 = vadd.f32 %v1271, %v1272
      %v1274 = vsel %vm998, %v1257, 0.0
      %v1275 = vadd.f32 %v1273, %v1274
      %v1276 = vsel %vm998, %v1258, 0.0
      %v1277 = vadd.f32 %v1275, %v1276
      %v1278 = vsel %vm998, %v1259, 0.0
      %v1279 = vadd.f32 %v1277, %v1278
      %v1280 = vsel %vm998, %v1260, 0.0
      %v1281 = vadd.f32 %v1279, %v1280
      %v1282 = vsel %vm998, %v1261, 0.0
      %v1283 = vadd.f32 %v1281, %v1282
      %v1284 = vsel %vm998, %v1262, 0.0
      %v1285 = vadd.f32 %v1283, %v1284
      %v1286 = vsel %vm998, %v1263, 0.0
      %v1287 = vadd.f32 %v1285, %v1286
      %v1288 = vsel %vm998, %v1264, 0.0
      %v1289 = vadd.f32 %v1287, %v1288
      %v1290 = vsel %vm998, %v1265, 0.0
      %v1291 = vadd.f32 %v1289, %v1290
      %v1292 = vsel %vm998, %v1266, 0.0
      %v1293 = vadd.f32 %v1291, %v1292
      %v1294 = vsel %vm998, %v1267, 0.0
      %v1295 = vadd.f32 %v1293, %v1294
      %v1296 = vsel %vm998, %v1268, 0.0
      %v1297 = vadd.f32 %v1295, %v1296
      %v1298 = vsel %vm998, %v1269, 0.0
      %v1299 = vadd.f32 %v1297, %v1298
      %v1300 = vsel %vm998, %v1270, 0.0
      %v1301 = vadd.f32 %v1299, %v1300
      %v1302 = vrot.slane %v1301, 4
      %v1303 = vadd.f32 %v1301, %v1302
      %v1304 = vrot.slane %v1303, 2
      %v1305 = vadd.f32 %v1303, %v1304
      %v1306 = vrot.slane %v1305, 1
      %v1307 = vadd.f32 %v1305, %v1306
      %1309 = vrot.lane.b32.xlu0 %v1254, 120
      %v1310 = vpop.permute.xlu0 %1309
      %v1312 = vadd.f32 %v1254, %v1310
      %1313 = vrot.lane.b32.xlu0 %v1254, 112
      %v1314 = vpop.permute.xlu0 %1313
      %v1316 = vadd.f32 %v1312, %v1314
      %1317 = vrot.lane.b32.xlu0 %v1254, 104
      %v1318 = vpop.permute.xlu0 %1317
      %v1320 = vadd.f32 %v1316, %v1318
      %1322 = vrot.lane.b32.xlu0 %v1307, 120
      %v1323 = vpop.permute.xlu0 %1322
      %v1325 = vadd.f32 %v1307, %v1323
      %1326 = vrot.lane.b32.xlu0 %v1307, 112
      %v1327 = vpop.permute.xlu0 %1326
      %v1329 = vadd.f32 %v1325, %v1327
      %1330 = vrot.lane.b32.xlu0 %v1307, 104
      %v1331 = vpop.permute.xlu0 %1330
      %v1333 = vadd.f32 %v1329, %v1331
      %p1334 = scmp.eq.s32.totalorder %s20, 0
      // Predicated region
      $region29: #{unet_up.1} parent=27 // pred_check
        %p1335 = pneg %p1334
      $region30: #{unet_up.1} parent=27 // pred_check_branch
        %1337 = sbr.rel (%p1335) target = $region32
      $region31: #{unet_up.1} parent=27 // pred_region
        %vm1338 = vcmask 58368
        %1339 = vst.msk [vmem:[%s220] sm:$0x3] %vm1338, 0.0
      $region32: #{unet_up.1} parent=27 // pred_fallthru
        _
      %v1340 = vld [vmem:[%s220] sm:$0x3]
      %v1342 = vrot.slane %v1333, 7
      %vm1344 = vcmask 1040384
      %v1345 = vsel %vm1344, %v1320, %v1342
      %v1346 = vadd.f32 %v1340, %v1345
      %vm1347 = vcmask 58368
      %1348 = vst.msk [vmem:[%s220] sm:$0x3] %vm1347, %v1346
      %1349 = vst.msk [vmem:[%s215] sm:$0xff] %vm998, %v1140
      %1350 = vst.msk [vmem:[%s215 + $0x8] sm:$0xff] %vm998, %v1145
      %1351 = vst.msk [vmem:[%s215 + $0x10] sm:$0xff] %vm998, %v1150
      %1352 = vst.msk [vmem:[%s215 + $0x18] sm:$0xff] %vm998, %v1155
      %1353 = vst.msk [vmem:[%s215 + $0x20] sm:$0xff] %vm998, %v1160
      %1354 = vst.msk [vmem:[%s215 + $0x28] sm:$0xff] %vm998, %v1165
      %1355 = vst.msk [vmem:[%s215 + $0x30] sm:$0xff] %vm998, %v1170
      %1356 = vst.msk [vmem:[%s215 + $0x38] sm:$0xff] %vm998, %v1175
      %1357 = vst.msk [vmem:[%s215 + $0x40] sm:$0xff] %vm998, %v1180
      %1358 = vst.msk [vmem:[%s215 + $0x48] sm:$0xff] %vm998, %v1185
      %1359 = vst.msk [vmem:[%s215 + $0x50] sm:$0xff] %vm998, %v1190
      %1360 = vst.msk [vmem:[%s215 + $0x58] sm:$0xff] %vm998, %v1195
      %1361 = vst.msk [vmem:[%s215 + $0x60] sm:$0xff] %vm998, %v1200
      %1362 = vst.msk [vmem:[%s215 + $0x68] sm:$0xff] %vm998, %v1205
      %1363 = vst.msk [vmem:[%s215 + $0x70] sm:$0xff] %vm998, %v1210
      %1364 = vst.msk [vmem:[%s215 + $0x78] sm:$0xff] %vm998, %v1215
      %s1365 = smul.u32 8, %s20
      %p1366 = scmp.lt.s32.totalorder %s19, 1
      %s1367 = scalar_select %p1366, %s19, 1
      %p1368 = scmp.lt.s32.totalorder %s1365, 15
      %s1369 = scalar_select %p1368, %s1365, 15
      %s1370 = smul.addr %s1369, 2
      %s1371 = smul.addr %s1367, 32
      %s1372 = sadd.s32 %s1370, %s1371
      %s1373 = smul.addr %s1372, 8
      %s1374 = scalar_lea.vmem %s2, %s1373
      %p1375 = scmp.lt.s32.totalorder %s19, 1
      %s1376 = scalar_select %p1375, %s19, 1
      %s1377 = smul.addr %s1376, 2
      %s1378 = scalar_lea.vmem %s3, %s1377
      // Predicated region
      $region33: #{unet_up.1} parent=27 // pred_check
        %p1379 = pneg %p96
      $region34: #{unet_up.1} parent=27 // pred_check_branch
        %1381 = sbr.rel (%p1379) target = $region36
      $region35: #{unet_up.1} parent=27 // pred_region
        %s1382 = smul.u32 8, %s20
      $region36: #{unet_up.1} parent=27 // pred_fallthru
        _
      // Predicated region
      $region37: #{unet_up.1} parent=27 // pred_check
        %p1383 = pneg %p122
      $region38: #{unet_up.1} parent=27 // pred_check_branch
        %1385 = sbr.rel (%p1383) target = $region40
      $region39: #{unet_up.1} parent=27 // pred_region
        _
      $region40: #{unet_up.1} parent=27 // pred_fallthru
        _
    $region28: #{unet_up.1} parent=5 // pred_fallthru
      _
    %p1386 = scmp.le.s32.totalorder 2, %s10
    // Predicated region
    $region41: #{unet_up.1} parent=5 // pred_check
      %p1387 = pneg %p1386
    $region42: #{unet_up.1} parent=5 // pred_check_branch
      %1389 = sbr.rel (%p1387) target = $region44
    $region43: #{unet_up.1} parent=5 // pred_region
      %s1390 = ssub.s32 %s10, 2
      // Predicated region
      $region45: #{unet_up.1} parent=43 // pred_check
        %p1391 = pneg %p102
      $region46: #{unet_up.1} parent=43 // pred_check_branch
        %1393 = sbr.rel (%p1391) target = $region48
      $region47: #{unet_up.1} parent=43 // pred_region
        %s1394 = smul.u32 8, %s22
        %p1395 = scmp.lt.s32.totalorder %s21, 1
        %s1396 = scalar_select %p1395, %s21, 1
        %p1397 = scmp.lt.s32.totalorder %s1394, 15
        %s1398 = scalar_select %p1397, %s1394, 15
        %s1399 = smul.addr %s1398, 2
        %s1400 = smul.addr %s1396, 32
        %s1401 = sadd.s32 %s1399, %s1400
        %s1402 = smul.addr %s1401, 8
        %s1403 = scalar_lea.vmem %s2, %s1402
      $region48: #{unet_up.1} parent=43 // pred_fallthru
        _
      // Predicated region
      $region49: #{unet_up.1} parent=43 // pred_check
        %p1404 = pneg %p128
      $region50: #{unet_up.1} parent=43 // pred_check_branch
        %1406 = sbr.rel (%p1404) target = $region52
      $region51: #{unet_up.1} parent=43 // pred_region
        %p1407 = scmp.lt.s32.totalorder %s21, 1
        %s1408 = scalar_select %p1407, %s21, 1
        %s1409 = smul.addr %s1408, 2
        %s1410 = scalar_lea.vmem %s3, %s1409
      $region52: #{unet_up.1} parent=43 // pred_fallthru
        _
    $region44: #{unet_up.1} parent=5 // pred_fallthru
      _
  $region6: #{unet_up.1} parent=0 // loop_footer
    %s14 = sadd.s32 1, %s10
  $region7: #{unet_up.1} parent=0 // loop_footer_branch
    %9 = sbr.rel target = $region3
  $region8: #{unet_up.1} parent=0 // loop_exit
    _

</llo_original>
